<compile_context>
chip_gen: v6e
topology: v6e:2x2x1
jax: 0.10.0
libtpu: 0.0.40
codegen_flags: <defaults>
</compile_context>

<pallas_src>
import jax
import jax.numpy as jnp
import numpy as np
from jax.experimental import pallas as pl
from jax.experimental.pallas import tpu as pltpu

_LANE = 128


def _gin_kernel(eps_ref, idx_ref, x_ref, src_ref, w_ref, b_ref, o_ref):
    """One grid step == (batch b, lane-tile j of the vertex dimension).

    Ref shapes (leading size-1 batch dim squeezed away):
      idx_ref : (K, tN)     int32   neighbor indices for this tile's vertices
      x_ref   : (C_in, tN)          center-vertex features
      src_ref : (C_in, Nsp)         full gather source (x or y) for this batch
      w_ref   : (C_out, C_in)       1x1x1 conv weight
      b_ref   : (C_out, 1)          conv bias
      o_ref   : (C_out, tN)         output tile
    """
    nsp = src_ref.shape[1]
    tn = x_ref.shape[1]
    k_nbrs = idx_ref.shape[0]

    # Transposed neighbor-count matrix built in VMEM from the tiny edge list:
    #   counts[m, n] = #{k : idx[k, n] == m}   so that  src @ counts == sum_k x_j
    row_ids = jax.lax.broadcasted_iota(jnp.int32, (nsp, tn), 0)
    counts = jnp.zeros((nsp, tn), jnp.float32)
    for k in range(k_nbrs):  # K is small and static -> unrolled VPU compares/adds
        counts = counts + (row_ids == idx_ref[k:k + 1, :]).astype(jnp.float32)

    # Neighbor aggregation on the MXU.
    agg = jnp.dot(src_ref[...], counts, preferred_element_type=jnp.float32)

    # GIN update (VPU).
    h = (1.0 + eps_ref[0]) * x_ref[...] + agg

    # 1x1x1 Conv3d == channel matmul + bias, then ReLU (MXU + VPU).
    y = jnp.dot(w_ref[...], h, preferred_element_type=jnp.float32) + b_ref[...]
    o_ref[...] = jnp.maximum(y, 0.0).astype(o_ref.dtype)


def _round_up(v, m):
    return (v + m - 1) // m * m


def gin_conv3d(x, edge_index, weight, bias, eps, y=None):
    """x: (B, C_in, N, 1, 1), edge_index: (2, B, N, K) int32 -> (B, C_out, N, 1, 1)."""
    B, C_in, N = x.shape[0], x.shape[1], x.shape[2]
    C_out = weight.shape[0]
    K = edge_index.shape[-1]
    src5 = x if y is None else y
    Ns = src5.shape[2]

    # ----- glue (plain JAX, layout-preserving): keep the PyTorch channel-major
    # (B, C, N) layout; just pad the vertex dim up to the 128-lane width.
    Np = _round_up(N, _LANE)
    Nsp = _round_up(Ns, _LANE)

    x3 = jnp.pad(x.reshape(B, C_in, N).astype(jnp.float32),
                 ((0, 0), (0, 0), (0, Np - N)))
    src3 = jnp.pad(src5.reshape(B, C_in, Ns).astype(jnp.float32),
                   ((0, 0), (0, 0), (0, Nsp - Ns)))

    # Edge list as (B, K, Np): lane dim = destination vertex (tiny int32 tensor).
    idx = jnp.transpose(edge_index[0], (0, 2, 1)).astype(jnp.int32)   # (B, K, N)
    idx = jnp.pad(idx, ((0, 0), (0, 0), (0, Np - N)))                 # padded cols sliced off later

    w = weight.astype(jnp.float32)                                    # (C_out, C_in)
    b2d = bias.astype(jnp.float32).reshape(C_out, 1)
    eps1 = jnp.asarray(eps, jnp.float32).reshape(1)

    # Lane-tile the vertex dim so VMEM stays bounded at realistic N
    # (in-kernel count matrix is (Nsp, tN) f32; x/out tiles are (C, tN)).
    tn = next(t for t in (512, 256, 128) if Np % t == 0)
    grid = (B, Np // tn)

    out = pl.pallas_call(
        _gin_kernel,
        out_shape=jax.ShapeDtypeStruct((B, C_out, Np), jnp.float32),
        grid=grid,
        in_specs=[
            pl.BlockSpec(memory_space=pltpu.MemorySpace.SMEM),                    # eps (scalar)
            pl.BlockSpec((pl.Squeezed(), K, tn), lambda b, j: (b, 0, j)),         # edge list tile
            pl.BlockSpec((pl.Squeezed(), C_in, tn), lambda b, j: (b, 0, j)),      # x tile
            pl.BlockSpec((pl.Squeezed(), C_in, Nsp), lambda b, j: (b, 0, 0)),     # gather source
            pl.BlockSpec((C_out, C_in), lambda b, j: (0, 0)),                     # W
            pl.BlockSpec((C_out, 1), lambda b, j: (0, 0)),                        # bias
        ],
        out_specs=pl.BlockSpec((pl.Squeezed(), C_out, tn), lambda b, j: (b, 0, j)),
        compiler_params=pltpu.CompilerParams(
            dimension_semantics=("parallel", "parallel"),
            vmem_limit_bytes=64 * 1024 * 1024,
        ),
    )(eps1, idx, x3, src3, w, b2d)

    # Back to the PyTorch layout (B, C_out, N, 1, 1); drop lane padding.
    return out[:, :, :N].reshape(B, C_out, N, 1, 1)


def _reference(x, edge_index, weight, bias, eps, y=None):
    """Pure-JAX reference matching the PyTorch forward."""
    src = x if y is None else y
    idx = edge_index[0]                                    # (B, N, K)
    src_flat = src[:, :, :, 0, 0]                          # (B, C, Ns)
    x_j = jnp.take_along_axis(src_flat[:, :, None, :], idx[:, None, :, :], axis=3)  # (B,C,N,K)
    agg = x_j.sum(-1)[..., None, None]                     # (B, C, N, 1, 1)
    h = (1.0 + eps) * x + agg
    out = jnp.einsum("oc,bcnij->bonij", weight, h) + bias[None, :, None, None, None]
    return jnp.maximum(out, 0.0)


if __name__ == "__main__":
    key = jax.random.PRNGKey(0)
    B, C_in, C_out, N, K = 2, 32, 32, 16, 8
    k1, k2, k3, k4 = jax.random.split(key, 4)

    x = jax.random.normal(k1, (B, C_in, N, 1, 1), dtype=jnp.float32)
    edge_index = jax.random.randint(k2, (2, B, N, K), 0, N, dtype=jnp.int32)

    # deterministic parameter init (module __init__: Conv3d weight/bias, eps is learnable)
    weight = jax.random.normal(k3, (C_out, C_in), dtype=jnp.float32) * 0.1
    bias = jax.random.normal(k4, (C_out,), dtype=jnp.float32) * 0.1
    eps = jnp.float32(0.25)   # eps_init = 0.0 in the module; nonzero exercises the (1+eps) path

    out = gin_conv3d(x, edge_index, weight, bias, eps)
    out = jax.block_until_ready(out)

    ref = _reference(x, edge_index, weight, bias, eps)
    assert out.shape == (B, C_out, N, 1, 1)
    np.testing.assert_allclose(np.asarray(out), np.asarray(ref), rtol=1e-5, atol=1e-5)
    print("KERNEL_OK")
</pallas_src>

<mosaic_0001>
module attributes {stable_mosaic.version = 11 : i64} {
  func.func @_gin_kernel(%arg0: i32, %arg1: i32, %arg2: memref<1xf32, #tpu.memory_space<smem>>, %arg3: memref<1x8x128xi32, #tpu.memory_space<vmem>>, %arg4: memref<1x32x128xf32, #tpu.memory_space<vmem>>, %arg5: memref<1x32x128xf32, #tpu.memory_space<vmem>>, %arg6: memref<32x32xf32, #tpu.memory_space<vmem>>, %arg7: memref<32x1xf32, #tpu.memory_space<vmem>>, %arg8: memref<1x32x128xf32, #tpu.memory_space<vmem>>) attributes {dimension_semantics = [#tpu.dimension_semantics<parallel>, #tpu.dimension_semantics<parallel>], iteration_bounds = array<i64: 2, 1>, scalar_prefetch = 0 : i64, scratch_operands = 0 : i64, tpu.core_type = #tpu.core_type<tc>, window_params = [{transform_indices = @transform_0, window_bounds = array<i64: 1>}, {transform_indices = @transform_1, window_bounds = array<i64: 1, 8, 128>}, {transform_indices = @transform_2, window_bounds = array<i64: 1, 32, 128>}, {transform_indices = @transform_3, window_bounds = array<i64: 1, 32, 128>}, {pipeline_mode = #tpu.pipeline_mode<synchronous>, transform_indices = @transform_4, window_bounds = array<i64: 32, 32>}, {pipeline_mode = #tpu.pipeline_mode<synchronous>, transform_indices = @transform_5, window_bounds = array<i64: 32, 1>}, {transform_indices = @transform_6, window_bounds = array<i64: 1, 32, 128>}]} {
    %0 = tpu.iota {dimensions = array<i32: 0>} : vector<128x128xi32>
    %cst = arith.constant 0.000000e+00 : f32
    %1 = vector.broadcast %cst : f32 to vector<128x128xf32>
    %c0 = arith.constant 0 : index
    %c0_0 = arith.constant 0 : index
    %c0_1 = arith.constant 0 : index
    %2 = vector.load %arg3[%c0, %c0_0, %c0_1] : memref<1x8x128xi32, #tpu.memory_space<vmem>>, vector<1x1x128xi32>
    %3 = vector.shape_cast %2 : vector<1x1x128xi32> to vector<1x128xi32>
    %4 = vector.broadcast %3 : vector<1x128xi32> to vector<128x128xi32>
    %5 = arith.cmpi eq, %0, %4 : vector<128x128xi32>
    %6 = arith.extui %5 : vector<128x128xi1> to vector<128x128xi32>
    %7 = arith.sitofp %6 : vector<128x128xi32> to vector<128x128xf32>
    %8 = arith.addf %1, %7 : vector<128x128xf32>
    %c0_2 = arith.constant 0 : index
    %c1 = arith.constant 1 : index
    %c0_3 = arith.constant 0 : index
    %9 = vector.load %arg3[%c0_2, %c1, %c0_3] : memref<1x8x128xi32, #tpu.memory_space<vmem>>, vector<1x1x128xi32>
    %10 = vector.shape_cast %9 : vector<1x1x128xi32> to vector<1x128xi32>
    %11 = vector.broadcast %10 : vector<1x128xi32> to vector<128x128xi32>
    %12 = arith.cmpi eq, %0, %11 : vector<128x128xi32>
    %13 = arith.extui %12 : vector<128x128xi1> to vector<128x128xi32>
    %14 = arith.sitofp %13 : vector<128x128xi32> to vector<128x128xf32>
    %15 = arith.addf %8, %14 : vector<128x128xf32>
    %c0_4 = arith.constant 0 : index
    %c2 = arith.constant 2 : index
    %c0_5 = arith.constant 0 : index
    %16 = vector.load %arg3[%c0_4, %c2, %c0_5] : memref<1x8x128xi32, #tpu.memory_space<vmem>>, vector<1x1x128xi32>
    %17 = vector.shape_cast %16 : vector<1x1x128xi32> to vector<1x128xi32>
    %18 = vector.broadcast %17 : vector<1x128xi32> to vector<128x128xi32>
    %19 = arith.cmpi eq, %0, %18 : vector<128x128xi32>
    %20 = arith.extui %19 : vector<128x128xi1> to vector<128x128xi32>
    %21 = arith.sitofp %20 : vector<128x128xi32> to vector<128x128xf32>
    %22 = arith.addf %15, %21 : vector<128x128xf32>
    %c0_6 = arith.constant 0 : index
    %c3 = arith.constant 3 : index
    %c0_7 = arith.constant 0 : index
    %23 = vector.load %arg3[%c0_6, %c3, %c0_7] : memref<1x8x128xi32, #tpu.memory_space<vmem>>, vector<1x1x128xi32>
    %24 = vector.shape_cast %23 : vector<1x1x128xi32> to vector<1x128xi32>
    %25 = vector.broadcast %24 : vector<1x128xi32> to vector<128x128xi32>
    %26 = arith.cmpi eq, %0, %25 : vector<128x128xi32>
    %27 = arith.extui %26 : vector<128x128xi1> to vector<128x128xi32>
    %28 = arith.sitofp %27 : vector<128x128xi32> to vector<128x128xf32>
    %29 = arith.addf %22, %28 : vector<128x128xf32>
    %c0_8 = arith.constant 0 : index
    %c4 = arith.constant 4 : index
    %c0_9 = arith.constant 0 : index
    %30 = vector.load %arg3[%c0_8, %c4, %c0_9] : memref<1x8x128xi32, #tpu.memory_space<vmem>>, vector<1x1x128xi32>
    %31 = vector.shape_cast %30 : vector<1x1x128xi32> to vector<1x128xi32>
    %32 = vector.broadcast %31 : vector<1x128xi32> to vector<128x128xi32>
    %33 = arith.cmpi eq, %0, %32 : vector<128x128xi32>
    %34 = arith.extui %33 : vector<128x128xi1> to vector<128x128xi32>
    %35 = arith.sitofp %34 : vector<128x128xi32> to vector<128x128xf32>
    %36 = arith.addf %29, %35 : vector<128x128xf32>
    %c0_10 = arith.constant 0 : index
    %c5 = arith.constant 5 : index
    %c0_11 = arith.constant 0 : index
    %37 = vector.load %arg3[%c0_10, %c5, %c0_11] : memref<1x8x128xi32, #tpu.memory_space<vmem>>, vector<1x1x128xi32>
    %38 = vector.shape_cast %37 : vector<1x1x128xi32> to vector<1x128xi32>
    %39 = vector.broadcast %38 : vector<1x128xi32> to vector<128x128xi32>
    %40 = arith.cmpi eq, %0, %39 : vector<128x128xi32>
    %41 = arith.extui %40 : vector<128x128xi1> to vector<128x128xi32>
    %42 = arith.sitofp %41 : vector<128x128xi32> to vector<128x128xf32>
    %43 = arith.addf %36, %42 : vector<128x128xf32>
    %c0_12 = arith.constant 0 : index
    %c6 = arith.constant 6 : index
    %c0_13 = arith.constant 0 : index
    %44 = vector.load %arg3[%c0_12, %c6, %c0_13] : memref<1x8x128xi32, #tpu.memory_space<vmem>>, vector<1x1x128xi32>
    %45 = vector.shape_cast %44 : vector<1x1x128xi32> to vector<1x128xi32>
    %46 = vector.broadcast %45 : vector<1x128xi32> to vector<128x128xi32>
    %47 = arith.cmpi eq, %0, %46 : vector<128x128xi32>
    %48 = arith.extui %47 : vector<128x128xi1> to vector<128x128xi32>
    %49 = arith.sitofp %48 : vector<128x128xi32> to vector<128x128xf32>
    %50 = arith.addf %43, %49 : vector<128x128xf32>
    %c0_14 = arith.constant 0 : index
    %c7 = arith.constant 7 : index
    %c0_15 = arith.constant 0 : index
    %51 = vector.load %arg3[%c0_14, %c7, %c0_15] : memref<1x8x128xi32, #tpu.memory_space<vmem>>, vector<1x1x128xi32>
    %52 = vector.shape_cast %51 : vector<1x1x128xi32> to vector<1x128xi32>
    %53 = vector.broadcast %52 : vector<1x128xi32> to vector<128x128xi32>
    %54 = arith.cmpi eq, %0, %53 : vector<128x128xi32>
    %55 = arith.extui %54 : vector<128x128xi1> to vector<128x128xi32>
    %56 = arith.sitofp %55 : vector<128x128xi32> to vector<128x128xf32>
    %57 = arith.addf %50, %56 : vector<128x128xf32>
    %c0_16 = arith.constant 0 : index
    %c0_17 = arith.constant 0 : index
    %c0_18 = arith.constant 0 : index
    %58 = vector.load %arg5[%c0_16, %c0_17, %c0_18] : memref<1x32x128xf32, #tpu.memory_space<vmem>>, vector<1x32x128xf32>
    %59 = vector.shape_cast %58 : vector<1x32x128xf32> to vector<32x128xf32>
    %cst_19 = arith.constant dense<0.000000e+00> : vector<32x128xf32>
    %60 = tpu.matmul %59, %57, %cst_19 {dimension_numbers = #tpu.dot_dimension_numbers<[1], [0], [0], [1], [0, 0, 1, 1], [], []>} : vector<32x128xf32>, vector<128x128xf32>, vector<32x128xf32> -> vector<32x128xf32>
    %c0_20 = arith.constant 0 : index
    %61 = memref.load %arg2[%c0_20] : memref<1xf32, #tpu.memory_space<smem>>
    %cst_21 = arith.constant 1.000000e+00 : f32
    %62 = arith.addf %cst_21, %61 : f32
    %c0_22 = arith.constant 0 : index
    %c0_23 = arith.constant 0 : index
    %c0_24 = arith.constant 0 : index
    %63 = vector.load %arg4[%c0_22, %c0_23, %c0_24] : memref<1x32x128xf32, #tpu.memory_space<vmem>>, vector<1x32x128xf32>
    %64 = vector.shape_cast %63 : vector<1x32x128xf32> to vector<32x128xf32>
    %65 = vector.broadcast %62 : f32 to vector<32x128xf32>
    %66 = arith.mulf %65, %64 : vector<32x128xf32>
    %67 = arith.addf %66, %60 : vector<32x128xf32>
    %c0_25 = arith.constant 0 : index
    %c0_26 = arith.constant 0 : index
    %68 = vector.load %arg6[%c0_25, %c0_26] : memref<32x32xf32, #tpu.memory_space<vmem>>, vector<32x32xf32>
    %cst_27 = arith.constant dense<0.000000e+00> : vector<32x128xf32>
    %69 = tpu.matmul %68, %67, %cst_27 {dimension_numbers = #tpu.dot_dimension_numbers<[1], [0], [0], [1], [0, 0, 1, 1], [], []>} : vector<32x32xf32>, vector<32x128xf32>, vector<32x128xf32> -> vector<32x128xf32>
    %c0_28 = arith.constant 0 : index
    %c0_29 = arith.constant 0 : index
    %70 = vector.load %arg7[%c0_28, %c0_29] : memref<32x1xf32, #tpu.memory_space<vmem>>, vector<32x1xf32>
    %71 = vector.broadcast %70 : vector<32x1xf32> to vector<32x128xf32>
    %72 = arith.addf %69, %71 : vector<32x128xf32>
    %cst_30 = arith.constant 0.000000e+00 : f32
    %73 = vector.broadcast %cst_30 : f32 to vector<32x128xf32>
    %74 = arith.maximumf %72, %73 : vector<32x128xf32>
    %c0_31 = arith.constant 0 : index
    %c0_32 = arith.constant 0 : index
    %c0_33 = arith.constant 0 : index
    %75 = vector.load %arg8[%c0_31, %c0_32, %c0_33] : memref<1x32x128xf32, #tpu.memory_space<vmem>>, vector<1x32x128xf32>
    %76 = vector.shape_cast %75 : vector<1x32x128xf32> to vector<32x128xf32>
    %77 = vector.shape_cast %74 : vector<32x128xf32> to vector<1x32x128xf32>
    tpu.vector_store %arg8[%c0_31, %c0_32, %c0_33], %77 {strides = array<i32>} : memref<1x32x128xf32, #tpu.memory_space<vmem>>, vector<1x32x128xf32>,
    return
  }
  func.func @transform_0(%arg0: i32, %arg1: i32) -> i32 {
    %c0_i32 = arith.constant 0 : i32
    %c0_i32_0 = arith.constant 0 : i32
    return %c0_i32 : i32
  }
  func.func @transform_1(%arg0: i32, %arg1: i32) -> (i32, i32, i32) {
    %c0_i32 = arith.constant 0 : i32
    %c0_i32_0 = arith.constant 0 : i32
    return %arg0, %c0_i32, %arg1 : i32, i32, i32
  }
  func.func @transform_2(%arg0: i32, %arg1: i32) -> (i32, i32, i32) {
    %c0_i32 = arith.constant 0 : i32
    %c0_i32_0 = arith.constant 0 : i32
    return %arg0, %c0_i32, %arg1 : i32, i32, i32
  }
  func.func @transform_3(%arg0: i32, %arg1: i32) -> (i32, i32, i32) {
    %c0_i32 = arith.constant 0 : i32
    %c0_i32_0 = arith.constant 0 : i32
    %c0_i32_1 = arith.constant 0 : i32
    return %arg0, %c0_i32, %c0_i32_0 : i32, i32, i32
  }
  func.func @transform_4(%arg0: i32, %arg1: i32) -> (i32, i32) {
    %c0_i32 = arith.constant 0 : i32
    %c0_i32_0 = arith.constant 0 : i32
    %c0_i32_1 = arith.constant 0 : i32
    return %c0_i32, %c0_i32_0 : i32, i32
  }
  func.func @transform_5(%arg0: i32, %arg1: i32) -> (i32, i32) {
    %c0_i32 = arith.constant 0 : i32
    %c0_i32_0 = arith.constant 0 : i32
    %c0_i32_1 = arith.constant 0 : i32
    return %c0_i32, %c0_i32_0 : i32, i32
  }
  func.func @transform_6(%arg0: i32, %arg1: i32) -> (i32, i32, i32) {
    %c0_i32 = arith.constant 0 : i32
    %c0_i32_0 = arith.constant 0 : i32
    return %arg0, %c0_i32, %arg1 : i32, i32, i32
  }
}

</mosaic_0001>

<llo_original>
// kernel: tpu_custom_call.1
$region0: #{tpu_custom_call.1}
  #allocation0 [shape = 'u32[]', space=smem, size = 0x4, offset = 0x4, fixed_abs, tag = 'smem constant byte address 0x4 - core index']
  #allocation1 [shape = 'u32[144,128]{1,0:T(1,128)}', space=vmem, size = 0x12000, scoped, tag = 'internal scratch']
  #allocation2 [shape = 'f32[1]{0:T(128)S(6)}', space=smem, size = 0x200, scoped, tag = 'scoped memory for tpu_custom_call.1']
  %s0 = inlined_call_operand.<no memory space> [shape: f32[1], index: 0, kind: input, shape index: {}]
  %s1 = inlined_call_operand.hbm [shape: s32[2,8,128], index: 1, kind: input, shape index: {}]
  %s2 = inlined_call_operand.hbm [shape: f32[2,32,128], index: 2, kind: input, shape index: {}]
  %s3 = inlined_call_operand.hbm [shape: f32[2,32,128], index: 3, kind: input, shape index: {}]
  %s4 = inlined_call_operand.vmem [shape: f32[32,32], index: 4, kind: input, shape index: {}]
  %s5 = inlined_call_operand.vmem [shape: f32[32,1], index: 5, kind: input, shape index: {}]
  %s6 = inlined_call_operand.hbm [shape: f32[2,32,128], index: 6, kind: output, shape index: {}]
  %s7 = sld [smem:[#allocation0]]
  $region69: #{tpu_custom_call.1} parent=0
    _
  %s9 = ssub.s32 1, %s7
  %s10 = scalar_select 0, %s9, %s7
  %11 = sst [smem:[#allocation2]] %s0
  $region1: #{tpu_custom_call.1} parent=0
    #allocation3 [shape = 'u8[8192]{0}', space=vmem, size = 0x2000, scoped, tag = 'input window, operand 1']
    #allocation4 [shape = 's32[2]{0}', space=sflag, size = 0x8, scoped, tag = 'scoped memory for tpu_custom_call.1']
    #allocation5 [shape = 's32[2]{0}', space=sflag, size = 0x8, scoped, tag = 'scoped memory for tpu_custom_call.1']
    #allocation6 [shape = 'u8[32768]{0}', space=vmem, size = 0x8000, scoped, tag = 'input window, operand 2']
    #allocation7 [shape = 's32[2]{0}', space=sflag, size = 0x8, scoped, tag = 'scoped memory for tpu_custom_call.1']
    #allocation8 [shape = 'u8[32768]{0}', space=vmem, size = 0x8000, scoped, tag = 'input window, operand 3']
    #allocation9 [shape = 'u8[32768]{0}', space=vmem, size = 0x8000, scoped, tag = 'output window, operand 0']
    %12 = vsyncpa [#allocation4], 0
    %s13 = scalar_lea.sflag [#allocation4], 1
    %14 = vsyncpa %s13, 0
    %15 = vsyncpa [#allocation7], 0
    %s16 = scalar_lea.sflag [#allocation7], 1
    %17 = vsyncpa %s16, 0
    %18 = vsyncpa [#allocation5], 0
    %s19 = scalar_lea.sflag [#allocation5], 1
    %20 = vsyncpa %s19, 0
    loop: start=0, step=1, limit=4
    $region2: #{tpu_custom_call.1} parent=1 // loop_pre_header
      _
    $region3: #{tpu_custom_call.1} parent=1 // loop_header
      %s22 = sphi 0, %s26
      %p23 = scmp.ge.s32.totalorder %s22, 4
      %s29 = sphi 0, %s41
      %s30 = sphi 0, %s37
      %s31 = sphi 0, %s29
      %s32 = sphi 0, %s30
      %s33 = sphi 0, %s31
      %s34 = sphi 0, %s32
      %s42 = sphi 0, %s42
      %s44 = sphi 0, %s42
      %s45 = sphi 0, %s44
      %s59 = sphi 0, %s45
      %s67 = sphi 0, %s69
      %s70 = sphi 0, %s67
      %s71 = sphi 0, %s70
      %s87 = sphi 0, %s71
      %s95 = sphi 0, %s97
      %s98 = sphi 0, %s95
      %s99 = sphi 0, %s98
      %s115 = sphi 0, %s99
      %s121 = sphi 0, %s123
      %s124 = sphi 0, %s121
      %s125 = sphi 0, %s124
      %s141 = sphi 0, %s125
      %s145 = sphi 0, %s145
      %s147 = sphi 0, %s145
      %s148 = sphi 0, %s147
      %s162 = sphi 0, %s148
      %s166 = sphi 0, %s166
      %s168 = sphi 0, %s166
      %s169 = sphi 0, %s168
      %s183 = sphi 0, %s169
      %s191 = sphi 0, %s193
      %s194 = sphi 0, %s191
      %s195 = sphi 0, %s194
      %s211 = sphi 0, %s195
    $region4: #{tpu_custom_call.1} parent=1 // loop_header_branch
      %25 = sbr.rel (%p23) target = $region8
    $region5: #{tpu_custom_call.1} parent=1 // loop_body
      %s27 = ssub.s32 %s22, 1
      %s28 = ssub.s32 %s22, 2
      %s35 = sadd.s32 1, %s30
      %p36 = scmp.ge.s32.totalorder %s35, 1
      %s37 = scalar_select %p36, 0, %s35
      %s38 = sadd.s32 1, %s29
      %s39 = scalar_select %p36, %s38, %s29
      %p40 = scmp.ge.s32.totalorder %s39, 2
      %s41 = scalar_select %p40, 0, %s39
      %s43 = sadd.s32 %s42, 1
      %p46 = scmp.eq.s32.totalorder %s22, 1
      %p47 = scmp.ne.s32.totalorder %s42, %s44
      %p48 = scmp.eq.s32.totalorder %s22, 0
      %p49 = por %p47, %p48
      %p50 = scmp.ne.s32.totalorder %s42, %s44
      %p51 = scmp.eq.s32.totalorder %s27, 1
      %p52 = por %p50, %p51
      %p53 = scmp.ne.s32.totalorder %s44, %s45
      %p54 = scmp.eq.s32.totalorder %s27, 0
      %p55 = por %p53, %p54
      %p56 = scmp.ne.s32.totalorder %s44, %s45
      %p57 = scmp.eq.s32.totalorder %s28, 1
      %p58 = por %p56, %p57
      %p60 = scmp.ne.s32.totalorder %s45, %s59
      %p61 = scmp.eq.s32.totalorder %s28, 0
      %p62 = por %p60, %p61
      %s63 = ssub.s32 %s29, %s41
      %s64 = ssub.s32 %s30, %s37
      %s65 = sor.u32 %s63, %s64
      %p66 = scmp.eq.s32.totalorder %s65, 0
      %s68 = sadd.s32 %s67, 1
      %s69 = scalar_select %p66, %s67, %s68
      %p72 = pneg %p66
      %p73 = scmp.eq.s32.totalorder %s22, 1
      %p74 = por %p72, %p73
      %p75 = scmp.ne.s32.totalorder %s67, %s70
      %p76 = scmp.eq.s32.totalorder %s22, 0
      %p77 = por %p75, %p76
      %p78 = scmp.ne.s32.totalorder %s67, %s70
      %p79 = scmp.eq.s32.totalorder %s27, 1
      %p80 = por %p78, %p79
      %p81 = scmp.ne.s32.totalorder %s70, %s71
      %p82 = scmp.eq.s32.totalorder %s27, 0
      %p83 = por %p81, %p82
      %p84 = scmp.ne.s32.totalorder %s70, %s71
      %p85 = scmp.eq.s32.totalorder %s28, 1
      %p86 = por %p84, %p85
      %p88 = scmp.ne.s32.totalorder %s71, %s87
      %p89 = scmp.eq.s32.totalorder %s28, 0
      %p90 = por %p88, %p89
      %s91 = ssub.s32 %s29, %s41
      %s92 = ssub.s32 %s30, %s37
      %s93 = sor.u32 %s91, %s92
      %p94 = scmp.eq.s32.totalorder %s93, 0
      %s96 = sadd.s32 %s95, 1
      %s97 = scalar_select %p94, %s95, %s96
      %p100 = pneg %p94
      %p101 = scmp.eq.s32.totalorder %s22, 1
      %p102 = por %p100, %p101
      %p103 = scmp.ne.s32.totalorder %s95, %s98
      %p104 = scmp.eq.s32.totalorder %s22, 0
      %p105 = por %p103, %p104
      %p106 = scmp.ne.s32.totalorder %s95, %s98
      %p107 = scmp.eq.s32.totalorder %s27, 1
      %p108 = por %p106, %p107
      %p109 = scmp.ne.s32.totalorder %s98, %s99
      %p110 = scmp.eq.s32.totalorder %s27, 0
      %p111 = por %p109, %p110
      %p112 = scmp.ne.s32.totalorder %s98, %s99
      %p113 = scmp.eq.s32.totalorder %s28, 1
      %p114 = por %p112, %p113
      %p116 = scmp.ne.s32.totalorder %s99, %s115
      %p117 = scmp.eq.s32.totalorder %s28, 0
      %p118 = por %p116, %p117
      %s119 = ssub.s32 %s29, %s41
      %p120 = scmp.eq.s32.totalorder %s119, 0
      %s122 = sadd.s32 %s121, 1
      %s123 = scalar_select %p120, %s121, %s122
      %p126 = pneg %p120
      %p127 = scmp.eq.s32.totalorder %s22, 1
      %p128 = por %p126, %p127
      %p129 = scmp.ne.s32.totalorder %s121, %s124
      %p130 = scmp.eq.s32.totalorder %s22, 0
      %p131 = por %p129, %p130
      %p132 = scmp.ne.s32.totalorder %s121, %s124
      %p133 = scmp.eq.s32.totalorder %s27, 1
      %p134 = por %p132, %p133
      %p135 = scmp.ne.s32.totalorder %s124, %s125
      %p136 = scmp.eq.s32.totalorder %s27, 0
      %p137 = por %p135, %p136
      %p138 = scmp.ne.s32.totalorder %s124, %s125
      %p139 = scmp.eq.s32.totalorder %s28, 1
      %p140 = por %p138, %p139
      %p142 = scmp.ne.s32.totalorder %s125, %s141
      %p143 = scmp.eq.s32.totalorder %s28, 0
      %p144 = por %p142, %p143
      %s146 = sadd.s32 %s145, 1
      %p149 = scmp.eq.s32.totalorder %s22, 1
      %p150 = scmp.ne.s32.totalorder %s145, %s147
      %p151 = scmp.eq.s32.totalorder %s22, 0
      %p152 = por %p150, %p151
      %p153 = scmp.ne.s32.totalorder %s145, %s147
      %p154 = scmp.eq.s32.totalorder %s27, 1
      %p155 = por %p153, %p154
      %p156 = scmp.ne.s32.totalorder %s147, %s148
      %p157 = scmp.eq.s32.totalorder %s27, 0
      %p158 = por %p156, %p157
      %p159 = scmp.ne.s32.totalorder %s147, %s148
      %p160 = scmp.eq.s32.totalorder %s28, 1
      %p161 = por %p159, %p160
      %p163 = scmp.ne.s32.totalorder %s148, %s162
      %p164 = scmp.eq.s32.totalorder %s28, 0
      %p165 = por %p163, %p164
      %s167 = sadd.s32 %s166, 1
      %p170 = scmp.eq.s32.totalorder %s22, 1
      %p171 = scmp.ne.s32.totalorder %s166, %s168
      %p172 = scmp.eq.s32.totalorder %s22, 0
      %p173 = por %p171, %p172
      %p174 = scmp.ne.s32.totalorder %s166, %s168
      %p175 = scmp.eq.s32.totalorder %s27, 1
      %p176 = por %p174, %p175
      %p177 = scmp.ne.s32.totalorder %s168, %s169
      %p178 = scmp.eq.s32.totalorder %s27, 0
      %p179 = por %p177, %p178
      %p180 = scmp.ne.s32.totalorder %s168, %s169
      %p181 = scmp.eq.s32.totalorder %s28, 1
      %p182 = por %p180, %p181
      %p184 = scmp.ne.s32.totalorder %s169, %s183
      %p185 = scmp.eq.s32.totalorder %s28, 0
      %p186 = por %p184, %p185
      %s187 = ssub.s32 %s29, %s41
      %s188 = ssub.s32 %s30, %s37
      %s189 = sor.u32 %s187, %s188
      %p190 = scmp.eq.s32.totalorder %s189, 0
      %s192 = sadd.s32 %s191, 1
      %s193 = scalar_select %p190, %s191, %s192
      %p196 = pneg %p190
      %p197 = scmp.eq.s32.totalorder %s22, 1
      %p198 = por %p196, %p197
      %p199 = scmp.ne.s32.totalorder %s191, %s194
      %p200 = scmp.eq.s32.totalorder %s22, 0
      %p201 = por %p199, %p200
      %p202 = scmp.ne.s32.totalorder %s191, %s194
      %p203 = scmp.eq.s32.totalorder %s27, 1
      %p204 = por %p202, %p203
      %p205 = scmp.ne.s32.totalorder %s194, %s195
      %p206 = scmp.eq.s32.totalorder %s27, 0
      %p207 = por %p205, %p206
      %p208 = scmp.ne.s32.totalorder %s194, %s195
      %p209 = scmp.eq.s32.totalorder %s28, 1
      %p210 = por %p208, %p209
      %p212 = scmp.ne.s32.totalorder %s195, %s211
      %p213 = scmp.eq.s32.totalorder %s28, 0
      %p214 = por %p212, %p213
      %p215 = scmp.le.s32.totalorder 1, %s22
      %p216 = scmp.lt.s32.totalorder %s22, 3
      %p217 = pnand %p215, %p216
      %p218 = pneg %p217
      // Predicated region
      $region9: #{tpu_custom_call.1} parent=5 // pred_check
        _
      $region10: #{tpu_custom_call.1} parent=5 // pred_check_branch
        %220 = sbr.rel (%p217) target = $region12
      $region11: #{tpu_custom_call.1} parent=5 // pred_region
        %s221 = ssub.s32 %s22, 1
        // Predicated region
        $region13: #{tpu_custom_call.1} parent=11 // pred_check
          %p222 = pneg %p55
        $region14: #{tpu_custom_call.1} parent=11 // pred_check_branch
          %224 = sbr.rel (%p222) target = $region16
        $region15: #{tpu_custom_call.1} parent=11 // pred_region
          _
        $region16: #{tpu_custom_call.1} parent=11 // pred_fallthru
          _
        // Predicated region
        $region17: #{tpu_custom_call.1} parent=11 // pred_check
          %p225 = pneg %p158
        $region18: #{tpu_custom_call.1} parent=11 // pred_check_branch
          %227 = sbr.rel (%p225) target = $region20
        $region19: #{tpu_custom_call.1} parent=11 // pred_region
          _
        $region20: #{tpu_custom_call.1} parent=11 // pred_fallthru
          _
        // Predicated region
        $region21: #{tpu_custom_call.1} parent=11 // pred_check
          %p228 = pneg %p179
        $region22: #{tpu_custom_call.1} parent=11 // pred_check_branch
          %230 = sbr.rel (%p228) target = $region24
        $region23: #{tpu_custom_call.1} parent=11 // pred_region
          _
        $region24: #{tpu_custom_call.1} parent=11 // pred_fallthru
          _
      $region12: #{tpu_custom_call.1} parent=5 // pred_fallthru
        _
      %p231 = scmp.lt.s32.totalorder %s22, 2
      // Predicated region
      $region25: #{tpu_custom_call.1} parent=5 // pred_check
        %p232 = pneg %p231
      $region26: #{tpu_custom_call.1} parent=5 // pred_check_branch
        %234 = sbr.rel (%p232) target = $region28
      $region27: #{tpu_custom_call.1} parent=5 // pred_region
        // Predicated region
        $region29: #{tpu_custom_call.1} parent=27 // pred_check
          %p235 = pneg %p77
        $region30: #{tpu_custom_call.1} parent=27 // pred_check_branch
          %237 = sbr.rel (%p235) target = $region32
        $region31: #{tpu_custom_call.1} parent=27 // pred_region
          %s238 = sand.u32 %s67, 1
          %s239 = scalar_lea.sflag [#allocation4], %s238
          %s240 = sand.u32 %s67, 1
          %s241 = smul.addr %s240, 8
          %s242 = scalar_lea.vmem [#allocation3], %s241
          %s244 = ssub.s32 128, 128
          %245 = vsyncadd %s239, %s244
          %s246 = sadd.s32 %s30, %s29
          %s247 = smul.addr %s246, 128
          %s248 = scalar_lea.hbm %s1, %s247
          %s250 = sshll.u32 %s242, 4
          %s251 = int_to_ptr.vmem [resolvable:$true] %s250
          %253 = dma.hbm_to_vmem [thread:$0]  %s248, 128, %s251, %s239
        $region32: #{tpu_custom_call.1} parent=27 // pred_fallthru
          _
        // Predicated region
        $region33: #{tpu_custom_call.1} parent=27 // pred_check
          %p254 = pneg %p105
        $region34: #{tpu_custom_call.1} parent=27 // pred_check_branch
          %256 = sbr.rel (%p254) target = $region36
        $region35: #{tpu_custom_call.1} parent=27 // pred_region
          %s257 = sand.u32 %s22, 1
          %s258 = scalar_lea.sflag [#allocation7], %s257
          %s259 = sand.u32 %s95, 1
          %s260 = smul.addr %s259, 32
          %s261 = scalar_lea.vmem [#allocation6], %s260
          %s263 = ssub.s32 512, 512
          %264 = vsyncadd %s258, %s263
          %s265 = smul.addr %s29, 4
          %s266 = sadd.s32 %s30, %s265
          %s267 = smul.addr %s266, 128
          %s268 = scalar_lea.hbm %s2, %s267
          %s269 = sshll.u32 %s261, 4
          %s270 = int_to_ptr.vmem [resolvable:$true] %s269
          %275 = dma.hbm_to_vmem [thread:$0]  %s268, 512, %s270, %s258, 128, 128, 8
        $region36: #{tpu_custom_call.1} parent=27 // pred_fallthru
          _
        // Predicated region
        $region37: #{tpu_custom_call.1} parent=27 // pred_check
          %p276 = pneg %p131
        $region38: #{tpu_custom_call.1} parent=27 // pred_check_branch
          %278 = sbr.rel (%p276) target = $region40
        $region39: #{tpu_custom_call.1} parent=27 // pred_region
          %s279 = sand.u32 %s22, 1
          %s280 = scalar_lea.sflag [#allocation7], %s279
          %s281 = sand.u32 %s121, 1
          %s282 = smul.addr %s281, 32
          %s283 = scalar_lea.vmem [#allocation8], %s282
          %s285 = ssub.s32 512, 512
          %286 = vsyncadd %s280, %s285
          %s287 = smul.addr %s29, 4
          %s288 = smul.addr %s287, 128
          %s289 = scalar_lea.hbm %s3, %s288
          %s290 = sshll.u32 %s283, 4
          %s291 = int_to_ptr.vmem [resolvable:$true] %s290
          %296 = dma.hbm_to_vmem [thread:$0]  %s289, 512, %s291, %s280, 128, 128, 8
        $region40: #{tpu_custom_call.1} parent=27 // pred_fallthru
          _
      $region28: #{tpu_custom_call.1} parent=5 // pred_fallthru
        _
      %p297 = scmp.le.s32.totalorder 1, %s22
      %p298 = scmp.lt.s32.totalorder %s22, 3
      %p299 = pnand %p297, %p298
      %p300 = pneg %p299
      // Predicated region
      $region41: #{tpu_custom_call.1} parent=5 // pred_check
        _
      $region42: #{tpu_custom_call.1} parent=5 // pred_check_branch
        %302 = sbr.rel (%p299) target = $region44
      $region43: #{tpu_custom_call.1} parent=5 // pred_region
        %s303 = ssub.s32 %s22, 1
        %s304 = sand.u32 %s70, 1
        %s305 = scalar_lea.sflag [#allocation4], %s304
        %s306 = sand.u32 %s70, 1
        %s307 = smul.addr %s306, 8
        %s308 = scalar_lea.vmem [#allocation3], %s307
        // Predicated region
        $region45: #{tpu_custom_call.1} parent=43 // pred_check
          %p309 = pneg %p83
        $region46: #{tpu_custom_call.1} parent=43 // pred_check_branch
          %311 = sbr.rel (%p309) target = $region48
        $region47: #{tpu_custom_call.1} parent=43 // pred_region
          %312 = dma.done %s305, 128
        $region48: #{tpu_custom_call.1} parent=43 // pred_fallthru
          _
        %s313 = sand.u32 %s27, 1
        %s314 = scalar_lea.sflag [#allocation7], %s313
        %s315 = sand.u32 %s98, 1
        %s316 = smul.addr %s315, 32
        %s317 = scalar_lea.vmem [#allocation6], %s316
        // Predicated region
        $region49: #{tpu_custom_call.1} parent=43 // pred_check
          %p318 = pneg %p111
        $region50: #{tpu_custom_call.1} parent=43 // pred_check_branch
          %320 = sbr.rel (%p318) target = $region52
        $region51: #{tpu_custom_call.1} parent=43 // pred_region
          %321 = dma.done %s314, 512
        $region52: #{tpu_custom_call.1} parent=43 // pred_fallthru
          _
        %s322 = sand.u32 %s27, 1
        %s323 = scalar_lea.sflag [#allocation7], %s322
        %s324 = sand.u32 %s124, 1
        %s325 = smul.addr %s324, 32
        %s326 = scalar_lea.vmem [#allocation8], %s325
        // Predicated region
        $region53: #{tpu_custom_call.1} parent=43 // pred_check
          %p327 = pneg %p137
        $region54: #{tpu_custom_call.1} parent=43 // pred_check_branch
          %329 = sbr.rel (%p327) target = $region56
        $region55: #{tpu_custom_call.1} parent=43 // pred_region
          %330 = dma.done %s323, 512
        $region56: #{tpu_custom_call.1} parent=43 // pred_fallthru
          _
        %p331 = pneg %p55
        %p332 = pneg %p52
        %s333 = sand.u32 %s70, 1
        %s334 = scalar_lea.sflag [#allocation4], %s333
        %s335 = sand.u32 %s70, 1
        %s336 = smul.addr %s335, 8
        %s337 = scalar_lea.vmem [#allocation3], %s336
        %p338 = pneg %p83
        %p339 = pneg %p80
        %s340 = sand.u32 %s27, 1
        %s341 = scalar_lea.sflag [#allocation7], %s340
        %s342 = sand.u32 %s98, 1
        %s343 = smul.addr %s342, 32
        %s344 = scalar_lea.vmem [#allocation6], %s343
        %p345 = pneg %p111
        %p346 = pneg %p108
        %s347 = sand.u32 %s27, 1
        %s348 = scalar_lea.sflag [#allocation7], %s347
        %s349 = sand.u32 %s124, 1
        %s350 = smul.addr %s349, 32
        %s351 = scalar_lea.vmem [#allocation8], %s350
        %p352 = pneg %p137
        %p353 = pneg %p134
        %p354 = pneg %p158
        %p355 = pneg %p155
        %p356 = pneg %p179
        %p357 = pneg %p176
        %p358 = pneg %p207
        %p359 = pneg %p204
        %s360 = sand.u32 %s194, 1
        %s361 = scalar_lea.sflag [#allocation5], %s360
        %s362 = sand.u32 %s194, 1
        %s363 = smul.addr %s362, 32
        %s364 = scalar_lea.vmem [#allocation9], %s363
        %v365 = vlaneseq
        %v366 = vshrl.u32 %v365, 7
        %v367 = vadd.s32 %v366, 8
        %v368 = vadd.s32 %v366, 16
        %v369 = vadd.s32 %v366, 24
        %v370 = vadd.s32 %v366, 32
        %v371 = vadd.s32 %v366, 40
        %v372 = vadd.s32 %v366, 48
        %v373 = vadd.s32 %v366, 56
        %v374 = vadd.s32 %v366, 64
        %v375 = vadd.s32 %v366, 72
        %v376 = vadd.s32 %v366, 80
        %v377 = vadd.s32 %v366, 88
        %v378 = vadd.s32 %v366, 96
        %v379 = vadd.s32 %v366, 104
        %v380 = vadd.s32 %v366, 112
        %v381 = vadd.s32 %v366, 120
        %v382 = vld [vmem:[%s308] sm:$0x1]
        %v383 = vlaneseq
        %v384 = vshrl.u32 %v383, 7
        %v385 = vsub.s32 0, %v384
        %v386 = vrot.slane %v382, %v385
        %vm387 = vcmp.eq.s32.totalorder %v366, %v386
        %vm388 = vcmp.eq.s32.totalorder %v367, %v386
        %vm389 = vcmp.eq.s32.totalorder %v368, %v386
        %vm390 = vcmp.eq.s32.totalorder %v369, %v386
        %vm391 = vcmp.eq.s32.totalorder %v370, %v386
        %vm392 = vcmp.eq.s32.totalorder %v371, %v386
        %vm393 = vcmp.eq.s32.totalorder %v372, %v386
        %vm394 = vcmp.eq.s32.totalorder %v373, %v386
        %vm395 = vcmp.eq.s32.totalorder %v374, %v386
        %vm396 = vcmp.eq.s32.totalorder %v375, %v386
        %vm397 = vcmp.eq.s32.totalorder %v376, %v386
        %vm398 = vcmp.eq.s32.totalorder %v377, %v386
        %vm399 = vcmp.eq.s32.totalorder %v378, %v386
        %vm400 = vcmp.eq.s32.totalorder %v379, %v386
        %vm401 = vcmp.eq.s32.totalorder %v380, %v386
        %vm402 = vcmp.eq.s32.totalorder %v381, %v386
        %v403 = vsel %vm387, 1, 0
        %v404 = vsel %vm388, 1, 0
        %v405 = vsel %vm389, 1, 0
        %v406 = vsel %vm390, 1, 0
        %v407 = vsel %vm391, 1, 0
        %v408 = vsel %vm392, 1, 0
        %v409 = vsel %vm393, 1, 0
        %v410 = vsel %vm394, 1, 0
        %v411 = vsel %vm395, 1, 0
        %v412 = vsel %vm396, 1, 0
        %v413 = vsel %vm397, 1, 0
        %v414 = vsel %vm398, 1, 0
        %v415 = vsel %vm399, 1, 0
        %v416 = vsel %vm400, 1, 0
        %v417 = vsel %vm401, 1, 0
        %v418 = vsel %vm402, 1, 0
        %v419 = vcvt.s32.f32 %v403
        %v420 = vcvt.s32.f32 %v404
        %v421 = vcvt.s32.f32 %v405
        %v422 = vcvt.s32.f32 %v406
        %v423 = vcvt.s32.f32 %v407
        %v424 = vcvt.s32.f32 %v408
        %v425 = vcvt.s32.f32 %v409
        %v426 = vcvt.s32.f32 %v410
        %v427 = vcvt.s32.f32 %v411
        %v428 = vcvt.s32.f32 %v412
        %v429 = vcvt.s32.f32 %v413
        %v430 = vcvt.s32.f32 %v414
        %v431 = vcvt.s32.f32 %v415
        %v432 = vcvt.s32.f32 %v416
        %v433 = vcvt.s32.f32 %v417
        %v434 = vcvt.s32.f32 %v418
        %v435 = vadd.f32 %v419, 0.0
        %v436 = vadd.f32 %v420, 0.0
        %v437 = vadd.f32 %v421, 0.0
        %v438 = vadd.f32 %v422, 0.0
        %v439 = vadd.f32 %v423, 0.0
        %v440 = vadd.f32 %v424, 0.0
        %v441 = vadd.f32 %v425, 0.0
        %v442 = vadd.f32 %v426, 0.0
        %v443 = vadd.f32 %v427, 0.0
        %v444 = vadd.f32 %v428, 0.0
        %v445 = vadd.f32 %v429, 0.0
        %v446 = vadd.f32 %v430, 0.0
        %v447 = vadd.f32 %v431, 0.0
        %v448 = vadd.f32 %v432, 0.0
        %v449 = vadd.f32 %v433, 0.0
        %v450 = vadd.f32 %v434, 0.0
        %v451 = vld [vmem:[%s308 + $0x1] sm:$0x1]
        %v452 = vlaneseq
        %v453 = vshrl.u32 %v452, 7
        %v454 = vsub.s32 0, %v453
        %v455 = vrot.slane %v451, %v454
        %vm456 = vcmp.eq.s32.totalorder %v366, %v455
        %vm457 = vcmp.eq.s32.totalorder %v367, %v455
        %vm458 = vcmp.eq.s32.totalorder %v368, %v455
        %vm459 = vcmp.eq.s32.totalorder %v369, %v455
        %vm460 = vcmp.eq.s32.totalorder %v370, %v455
        %vm461 = vcmp.eq.s32.totalorder %v371, %v455
        %vm462 = vcmp.eq.s32.totalorder %v372, %v455
        %vm463 = vcmp.eq.s32.totalorder %v373, %v455
        %vm464 = vcmp.eq.s32.totalorder %v374, %v455
        %vm465 = vcmp.eq.s32.totalorder %v375, %v455
        %vm466 = vcmp.eq.s32.totalorder %v376, %v455
        %vm467 = vcmp.eq.s32.totalorder %v377, %v455
        %vm468 = vcmp.eq.s32.totalorder %v378, %v455
        %vm469 = vcmp.eq.s32.totalorder %v379, %v455
        %vm470 = vcmp.eq.s32.totalorder %v380, %v455
        %vm471 = vcmp.eq.s32.totalorder %v381, %v455
        %v472 = vsel %vm456, 1, 0
        %v473 = vsel %vm457, 1, 0
        %v474 = vsel %vm458, 1, 0
        %v475 = vsel %vm459, 1, 0
        %v476 = vsel %vm460, 1, 0
        %v477 = vsel %vm461, 1, 0
        %v478 = vsel %vm462, 1, 0
        %v479 = vsel %vm463, 1, 0
        %v480 = vsel %vm464, 1, 0
        %v481 = vsel %vm465, 1, 0
        %v482 = vsel %vm466, 1, 0
        %v483 = vsel %vm467, 1, 0
        %v484 = vsel %vm468, 1, 0
        %v485 = vsel %vm469, 1, 0
        %v486 = vsel %vm470, 1, 0
        %v487 = vsel %vm471, 1, 0
        %v488 = vcvt.s32.f32 %v472
        %v489 = vcvt.s32.f32 %v473
        %v490 = vcvt.s32.f32 %v474
        %v491 = vcvt.s32.f32 %v475
        %v492 = vcvt.s32.f32 %v476
        %v493 = vcvt.s32.f32 %v477
        %v494 = vcvt.s32.f32 %v478
        %v495 = vcvt.s32.f32 %v479
        %v496 = vcvt.s32.f32 %v480
        %v497 = vcvt.s32.f32 %v481
        %v498 = vcvt.s32.f32 %v482
        %v499 = vcvt.s32.f32 %v483
        %v500 = vcvt.s32.f32 %v484
        %v501 = vcvt.s32.f32 %v485
        %v502 = vcvt.s32.f32 %v486
        %v503 = vcvt.s32.f32 %v487
        %v504 = vadd.f32 %v435, %v488
        %v505 = vadd.f32 %v436, %v489
        %v506 = vadd.f32 %v437, %v490
        %v507 = vadd.f32 %v438, %v491
        %v508 = vadd.f32 %v439, %v492
        %v509 = vadd.f32 %v440, %v493
        %v510 = vadd.f32 %v441, %v494
        %v511 = vadd.f32 %v442, %v495
        %v512 = vadd.f32 %v443, %v496
        %v513 = vadd.f32 %v444, %v497
        %v514 = vadd.f32 %v445, %v498
        %v515 = vadd.f32 %v446, %v499
        %v516 = vadd.f32 %v447, %v500
        %v517 = vadd.f32 %v448, %v501
        %v518 = vadd.f32 %v449, %v502
        %v519 = vadd.f32 %v450, %v503
        %v520 = vld [vmem:[%s308 + $0x2] sm:$0x1]
        %v521 = vlaneseq
        %v522 = vshrl.u32 %v521, 7
        %v523 = vsub.s32 0, %v522
        %v524 = vrot.slane %v520, %v523
        %vm525 = vcmp.eq.s32.totalorder %v366, %v524
        %vm526 = vcmp.eq.s32.totalorder %v367, %v524
        %vm527 = vcmp.eq.s32.totalorder %v368, %v524
        %vm528 = vcmp.eq.s32.totalorder %v369, %v524
        %vm529 = vcmp.eq.s32.totalorder %v370, %v524
        %vm530 = vcmp.eq.s32.totalorder %v371, %v524
        %vm531 = vcmp.eq.s32.totalorder %v372, %v524
        %vm532 = vcmp.eq.s32.totalorder %v373, %v524
        %vm533 = vcmp.eq.s32.totalorder %v374, %v524
        %vm534 = vcmp.eq.s32.totalorder %v375, %v524
        %vm535 = vcmp.eq.s32.totalorder %v376, %v524
        %vm536 = vcmp.eq.s32.totalorder %v377, %v524
        %vm537 = vcmp.eq.s32.totalorder %v378, %v524
        %vm538 = vcmp.eq.s32.totalorder %v379, %v524
        %vm539 = vcmp.eq.s32.totalorder %v380, %v524
        %vm540 = vcmp.eq.s32.totalorder %v381, %v524
        %v541 = vsel %vm525, 1, 0
        %v542 = vsel %vm526, 1, 0
        %v543 = vsel %vm527, 1, 0
        %v544 = vsel %vm528, 1, 0
        %v545 = vsel %vm529, 1, 0
        %v546 = vsel %vm530, 1, 0
        %v547 = vsel %vm531, 1, 0
        %v548 = vsel %vm532, 1, 0
        %v549 = vsel %vm533, 1, 0
        %v550 = vsel %vm534, 1, 0
        %v551 = vsel %vm535, 1, 0
        %v552 = vsel %vm536, 1, 0
        %v553 = vsel %vm537, 1, 0
        %v554 = vsel %vm538, 1, 0
        %v555 = vsel %vm539, 1, 0
        %v556 = vsel %vm540, 1, 0
        %v557 = vcvt.s32.f32 %v541
        %v558 = vcvt.s32.f32 %v542
        %v559 = vcvt.s32.f32 %v543
        %v560 = vcvt.s32.f32 %v544
        %v561 = vcvt.s32.f32 %v545
        %v562 = vcvt.s32.f32 %v546
        %v563 = vcvt.s32.f32 %v547
        %v564 = vcvt.s32.f32 %v548
        %v565 = vcvt.s32.f32 %v549
        %v566 = vcvt.s32.f32 %v550
        %v567 = vcvt.s32.f32 %v551
        %v568 = vcvt.s32.f32 %v552
        %v569 = vcvt.s32.f32 %v553
        %v570 = vcvt.s32.f32 %v554
        %v571 = vcvt.s32.f32 %v555
        %v572 = vcvt.s32.f32 %v556
        %v573 = vadd.f32 %v504, %v557
        %v574 = vadd.f32 %v505, %v558
        %v575 = vadd.f32 %v506, %v559
        %v576 = vadd.f32 %v507, %v560
        %v577 = vadd.f32 %v508, %v561
        %v578 = vadd.f32 %v509, %v562
        %v579 = vadd.f32 %v510, %v563
        %v580 = vadd.f32 %v511, %v564
        %v581 = vadd.f32 %v512, %v565
        %v582 = vadd.f32 %v513, %v566
        %v583 = vadd.f32 %v514, %v567
        %v584 = vadd.f32 %v515, %v568
        %v585 = vadd.f32 %v516, %v569
        %v586 = vadd.f32 %v517, %v570
        %v587 = vadd.f32 %v518, %v571
        %v588 = vadd.f32 %v519, %v572
        %v589 = vld [vmem:[%s308 + $0x3] sm:$0x1]
        %v590 = vlaneseq
        %v591 = vshrl.u32 %v590, 7
        %v592 = vsub.s32 0, %v591
        %v593 = vrot.slane %v589, %v592
        %vm594 = vcmp.eq.s32.totalorder %v366, %v593
        %vm595 = vcmp.eq.s32.totalorder %v367, %v593
        %vm596 = vcmp.eq.s32.totalorder %v368, %v593
        %vm597 = vcmp.eq.s32.totalorder %v369, %v593
        %vm598 = vcmp.eq.s32.totalorder %v370, %v593
        %vm599 = vcmp.eq.s32.totalorder %v371, %v593
        %vm600 = vcmp.eq.s32.totalorder %v372, %v593
        %vm601 = vcmp.eq.s32.totalorder %v373, %v593
        %vm602 = vcmp.eq.s32.totalorder %v374, %v593
        %vm603 = vcmp.eq.s32.totalorder %v375, %v593
        %vm604 = vcmp.eq.s32.totalorder %v376, %v593
        %vm605 = vcmp.eq.s32.totalorder %v377, %v593
        %vm606 = vcmp.eq.s32.totalorder %v378, %v593
        %vm607 = vcmp.eq.s32.totalorder %v379, %v593
        %vm608 = vcmp.eq.s32.totalorder %v380, %v593
        %vm609 = vcmp.eq.s32.totalorder %v381, %v593
        %v610 = vsel %vm594, 1, 0
        %v611 = vsel %vm595, 1, 0
        %v612 = vsel %vm596, 1, 0
        %v613 = vsel %vm597, 1, 0
        %v614 = vsel %vm598, 1, 0
        %v615 = vsel %vm599, 1, 0
        %v616 = vsel %vm600, 1, 0
        %v617 = vsel %vm601, 1, 0
        %v618 = vsel %vm602, 1, 0
        %v619 = vsel %vm603, 1, 0
        %v620 = vsel %vm604, 1, 0
        %v621 = vsel %vm605, 1, 0
        %v622 = vsel %vm606, 1, 0
        %v623 = vsel %vm607, 1, 0
        %v624 = vsel %vm608, 1, 0
        %v625 = vsel %vm609, 1, 0
        %v626 = vcvt.s32.f32 %v610
        %v627 = vcvt.s32.f32 %v611
        %v628 = vcvt.s32.f32 %v612
        %v629 = vcvt.s32.f32 %v613
        %v630 = vcvt.s32.f32 %v614
        %v631 = vcvt.s32.f32 %v615
        %v632 = vcvt.s32.f32 %v616
        %v633 = vcvt.s32.f32 %v617
        %v634 = vcvt.s32.f32 %v618
        %v635 = vcvt.s32.f32 %v619
        %v636 = vcvt.s32.f32 %v620
        %v637 = vcvt.s32.f32 %v621
        %v638 = vcvt.s32.f32 %v622
        %v639 = vcvt.s32.f32 %v623
        %v640 = vcvt.s32.f32 %v624
        %v641 = vcvt.s32.f32 %v625
        %v642 = vadd.f32 %v573, %v626
        %v643 = vadd.f32 %v574, %v627
        %v644 = vadd.f32 %v575, %v628
        %v645 = vadd.f32 %v576, %v629
        %v646 = vadd.f32 %v577, %v630
        %v647 = vadd.f32 %v578, %v631
        %v648 = vadd.f32 %v579, %v632
        %v649 = vadd.f32 %v580, %v633
        %v650 = vadd.f32 %v581, %v634
        %v651 = vadd.f32 %v582, %v635
        %v652 = vadd.f32 %v583, %v636
        %v653 = vadd.f32 %v584, %v637
        %v654 = vadd.f32 %v585, %v638
        %v655 = vadd.f32 %v586, %v639
        %v656 = vadd.f32 %v587, %v640
        %v657 = vadd.f32 %v588, %v641
        %v658 = vld [vmem:[%s308 + $0x4] sm:$0x1]
        %v659 = vlaneseq
        %v660 = vshrl.u32 %v659, 7
        %v661 = vsub.s32 0, %v660
        %v662 = vrot.slane %v658, %v661
        %vm663 = vcmp.eq.s32.totalorder %v366, %v662
        %vm664 = vcmp.eq.s32.totalorder %v367, %v662
        %vm665 = vcmp.eq.s32.totalorder %v368, %v662
        %vm666 = vcmp.eq.s32.totalorder %v369, %v662
        %vm667 = vcmp.eq.s32.totalorder %v370, %v662
        %vm668 = vcmp.eq.s32.totalorder %v371, %v662
        %vm669 = vcmp.eq.s32.totalorder %v372, %v662
        %vm670 = vcmp.eq.s32.totalorder %v373, %v662
        %vm671 = vcmp.eq.s32.totalorder %v374, %v662
        %vm672 = vcmp.eq.s32.totalorder %v375, %v662
        %vm673 = vcmp.eq.s32.totalorder %v376, %v662
        %vm674 = vcmp.eq.s32.totalorder %v377, %v662
        %vm675 = vcmp.eq.s32.totalorder %v378, %v662
        %vm676 = vcmp.eq.s32.totalorder %v379, %v662
        %vm677 = vcmp.eq.s32.totalorder %v380, %v662
        %vm678 = vcmp.eq.s32.totalorder %v381, %v662
        %v679 = vsel %vm663, 1, 0
        %v680 = vsel %vm664, 1, 0
        %v681 = vsel %vm665, 1, 0
        %v682 = vsel %vm666, 1, 0
        %v683 = vsel %vm667, 1, 0
        %v684 = vsel %vm668, 1, 0
        %v685 = vsel %vm669, 1, 0
        %v686 = vsel %vm670, 1, 0
        %v687 = vsel %vm671, 1, 0
        %v688 = vsel %vm672, 1, 0
        %v689 = vsel %vm673, 1, 0
        %v690 = vsel %vm674, 1, 0
        %v691 = vsel %vm675, 1, 0
        %v692 = vsel %vm676, 1, 0
        %v693 = vsel %vm677, 1, 0
        %v694 = vsel %vm678, 1, 0
        %v695 = vcvt.s32.f32 %v679
        %v696 = vcvt.s32.f32 %v680
        %v697 = vcvt.s32.f32 %v681
        %v698 = vcvt.s32.f32 %v682
        %v699 = vcvt.s32.f32 %v683
        %v700 = vcvt.s32.f32 %v684
        %v701 = vcvt.s32.f32 %v685
        %v702 = vcvt.s32.f32 %v686
        %v703 = vcvt.s32.f32 %v687
        %v704 = vcvt.s32.f32 %v688
        %v705 = vcvt.s32.f32 %v689
        %v706 = vcvt.s32.f32 %v690
        %v707 = vcvt.s32.f32 %v691
        %v708 = vcvt.s32.f32 %v692
        %v709 = vcvt.s32.f32 %v693
        %v710 = vcvt.s32.f32 %v694
        %v711 = vadd.f32 %v642, %v695
        %v712 = vadd.f32 %v643, %v696
        %v713 = vadd.f32 %v644, %v697
        %v714 = vadd.f32 %v645, %v698
        %v715 = vadd.f32 %v646, %v699
        %v716 = vadd.f32 %v647, %v700
        %v717 = vadd.f32 %v648, %v701
        %v718 = vadd.f32 %v649, %v702
        %v719 = vadd.f32 %v650, %v703
        %v720 = vadd.f32 %v651, %v704
        %v721 = vadd.f32 %v652, %v705
        %v722 = vadd.f32 %v653, %v706
        %v723 = vadd.f32 %v654, %v707
        %v724 = vadd.f32 %v655, %v708
        %v725 = vadd.f32 %v656, %v709
        %v726 = vadd.f32 %v657, %v710
        %v727 = vld [vmem:[%s308 + $0x5] sm:$0x1]
        %v728 = vlaneseq
        %v729 = vshrl.u32 %v728, 7
        %v730 = vsub.s32 0, %v729
        %v731 = vrot.slane %v727, %v730
        %vm732 = vcmp.eq.s32.totalorder %v366, %v731
        %vm733 = vcmp.eq.s32.totalorder %v367, %v731
        %vm734 = vcmp.eq.s32.totalorder %v368, %v731
        %vm735 = vcmp.eq.s32.totalorder %v369, %v731
        %vm736 = vcmp.eq.s32.totalorder %v370, %v731
        %vm737 = vcmp.eq.s32.totalorder %v371, %v731
        %vm738 = vcmp.eq.s32.totalorder %v372, %v731
        %vm739 = vcmp.eq.s32.totalorder %v373, %v731
        %vm740 = vcmp.eq.s32.totalorder %v374, %v731
        %vm741 = vcmp.eq.s32.totalorder %v375, %v731
        %vm742 = vcmp.eq.s32.totalorder %v376, %v731
        %vm743 = vcmp.eq.s32.totalorder %v377, %v731
        %vm744 = vcmp.eq.s32.totalorder %v378, %v731
        %vm745 = vcmp.eq.s32.totalorder %v379, %v731
        %vm746 = vcmp.eq.s32.totalorder %v380, %v731
        %vm747 = vcmp.eq.s32.totalorder %v381, %v731
        %v748 = vsel %vm732, 1, 0
        %v749 = vsel %vm733, 1, 0
        %v750 = vsel %vm734, 1, 0
        %v751 = vsel %vm735, 1, 0
        %v752 = vsel %vm736, 1, 0
        %v753 = vsel %vm737, 1, 0
        %v754 = vsel %vm738, 1, 0
        %v755 = vsel %vm739, 1, 0
        %v756 = vsel %vm740, 1, 0
        %v757 = vsel %vm741, 1, 0
        %v758 = vsel %vm742, 1, 0
        %v759 = vsel %vm743, 1, 0
        %v760 = vsel %vm744, 1, 0
        %v761 = vsel %vm745, 1, 0
        %v762 = vsel %vm746, 1, 0
        %v763 = vsel %vm747, 1, 0
        %v764 = vcvt.s32.f32 %v748
        %v765 = vcvt.s32.f32 %v749
        %v766 = vcvt.s32.f32 %v750
        %v767 = vcvt.s32.f32 %v751
        %v768 = vcvt.s32.f32 %v752
        %v769 = vcvt.s32.f32 %v753
        %v770 = vcvt.s32.f32 %v754
        %v771 = vcvt.s32.f32 %v755
        %v772 = vcvt.s32.f32 %v756
        %v773 = vcvt.s32.f32 %v757
        %v774 = vcvt.s32.f32 %v758
        %v775 = vcvt.s32.f32 %v759
        %v776 = vcvt.s32.f32 %v760
        %v777 = vcvt.s32.f32 %v761
        %v778 = vcvt.s32.f32 %v762
        %v779 = vcvt.s32.f32 %v763
        %v780 = vadd.f32 %v711, %v764
        %v781 = vadd.f32 %v712, %v765
        %v782 = vadd.f32 %v713, %v766
        %v783 = vadd.f32 %v714, %v767
        %v784 = vadd.f32 %v715, %v768
        %v785 = vadd.f32 %v716, %v769
        %v786 = vadd.f32 %v717, %v770
        %v787 = vadd.f32 %v718, %v771
        %v788 = vadd.f32 %v719, %v772
        %v789 = vadd.f32 %v720, %v773
        %v790 = vadd.f32 %v721, %v774
        %v791 = vadd.f32 %v722, %v775
        %v792 = vadd.f32 %v723, %v776
        %v793 = vadd.f32 %v724, %v777
        %v794 = vadd.f32 %v725, %v778
        %v795 = vadd.f32 %v726, %v779
        %v796 = vld [vmem:[%s308 + $0x6] sm:$0x1]
        %v797 = vlaneseq
        %v798 = vshrl.u32 %v797, 7
        %v799 = vsub.s32 0, %v798
        %v800 = vrot.slane %v796, %v799
        %vm801 = vcmp.eq.s32.totalorder %v366, %v800
        %vm802 = vcmp.eq.s32.totalorder %v367, %v800
        %vm803 = vcmp.eq.s32.totalorder %v368, %v800
        %vm804 = vcmp.eq.s32.totalorder %v369, %v800
        %vm805 = vcmp.eq.s32.totalorder %v370, %v800
        %vm806 = vcmp.eq.s32.totalorder %v371, %v800
        %vm807 = vcmp.eq.s32.totalorder %v372, %v800
        %vm808 = vcmp.eq.s32.totalorder %v373, %v800
        %vm809 = vcmp.eq.s32.totalorder %v374, %v800
        %vm810 = vcmp.eq.s32.totalorder %v375, %v800
        %vm811 = vcmp.eq.s32.totalorder %v376, %v800
        %vm812 = vcmp.eq.s32.totalorder %v377, %v800
        %vm813 = vcmp.eq.s32.totalorder %v378, %v800
        %vm814 = vcmp.eq.s32.totalorder %v379, %v800
        %vm815 = vcmp.eq.s32.totalorder %v380, %v800
        %vm816 = vcmp.eq.s32.totalorder %v381, %v800
        %v817 = vsel %vm801, 1, 0
        %v818 = vsel %vm802, 1, 0
        %v819 = vsel %vm803, 1, 0
        %v820 = vsel %vm804, 1, 0
        %v821 = vsel %vm805, 1, 0
        %v822 = vsel %vm806, 1, 0
        %v823 = vsel %vm807, 1, 0
        %v824 = vsel %vm808, 1, 0
        %v825 = vsel %vm809, 1, 0
        %v826 = vsel %vm810, 1, 0
        %v827 = vsel %vm811, 1, 0
        %v828 = vsel %vm812, 1, 0
        %v829 = vsel %vm813, 1, 0
        %v830 = vsel %vm814, 1, 0
        %v831 = vsel %vm815, 1, 0
        %v832 = vsel %vm816, 1, 0
        %v833 = vcvt.s32.f32 %v817
        %v834 = vcvt.s32.f32 %v818
        %v835 = vcvt.s32.f32 %v819
        %v836 = vcvt.s32.f32 %v820
        %v837 = vcvt.s32.f32 %v821
        %v838 = vcvt.s32.f32 %v822
        %v839 = vcvt.s32.f32 %v823
        %v840 = vcvt.s32.f32 %v824
        %v841 = vcvt.s32.f32 %v825
        %v842 = vcvt.s32.f32 %v826
        %v843 = vcvt.s32.f32 %v827
        %v844 = vcvt.s32.f32 %v828
        %v845 = vcvt.s32.f32 %v829
        %v846 = vcvt.s32.f32 %v830
        %v847 = vcvt.s32.f32 %v831
        %v848 = vcvt.s32.f32 %v832
        %v849 = vadd.f32 %v780, %v833
        %v850 = vadd.f32 %v781, %v834
        %v851 = vadd.f32 %v782, %v835
        %v852 = vadd.f32 %v783, %v836
        %v853 = vadd.f32 %v784, %v837
        %v854 = vadd.f32 %v785, %v838
        %v855 = vadd.f32 %v786, %v839
        %v856 = vadd.f32 %v787, %v840
        %v857 = vadd.f32 %v788, %v841
        %v858 = vadd.f32 %v789, %v842
        %v859 = vadd.f32 %v790, %v843
        %v860 = vadd.f32 %v791, %v844
        %v861 = vadd.f32 %v792, %v845
        %v862 = vadd.f32 %v793, %v846
        %v863 = vadd.f32 %v794, %v847
        %v864 = vadd.f32 %v795, %v848
        %v865 = vld [vmem:[%s308 + $0x7] sm:$0x1]
        %v866 = vlaneseq
        %v867 = vshrl.u32 %v866, 7
        %v868 = vsub.s32 0, %v867
        %v869 = vrot.slane %v865, %v868
        %vm870 = vcmp.eq.s32.totalorder %v366, %v869
        %vm871 = vcmp.eq.s32.totalorder %v367, %v869
        %vm872 = vcmp.eq.s32.totalorder %v368, %v869
        %vm873 = vcmp.eq.s32.totalorder %v369, %v869
        %vm874 = vcmp.eq.s32.totalorder %v370, %v869
        %vm875 = vcmp.eq.s32.totalorder %v371, %v869
        %vm876 = vcmp.eq.s32.totalorder %v372, %v869
        %vm877 = vcmp.eq.s32.totalorder %v373, %v869
        %vm878 = vcmp.eq.s32.totalorder %v374, %v869
        %vm879 = vcmp.eq.s32.totalorder %v375, %v869
        %vm880 = vcmp.eq.s32.totalorder %v376, %v869
        %vm881 = vcmp.eq.s32.totalorder %v377, %v869
        %vm882 = vcmp.eq.s32.totalorder %v378, %v869
        %vm883 = vcmp.eq.s32.totalorder %v379, %v869
        %vm884 = vcmp.eq.s32.totalorder %v380, %v869
        %vm885 = vcmp.eq.s32.totalorder %v381, %v869
        %v886 = vsel %vm870, 1, 0
        %v887 = vsel %vm871, 1, 0
        %v888 = vsel %vm872, 1, 0
        %v889 = vsel %vm873, 1, 0
        %v890 = vsel %vm874, 1, 0
        %v891 = vsel %vm875, 1, 0
        %v892 = vsel %vm876, 1, 0
        %v893 = vsel %vm877, 1, 0
        %v894 = vsel %vm878, 1, 0
        %v895 = vsel %vm879, 1, 0
        %v896 = vsel %vm880, 1, 0
        %v897 = vsel %vm881, 1, 0
        %v898 = vsel %vm882, 1, 0
        %v899 = vsel %vm883, 1, 0
        %v900 = vsel %vm884, 1, 0
        %v901 = vsel %vm885, 1, 0
        %v902 = vcvt.s32.f32 %v886
        %v903 = vcvt.s32.f32 %v887
        %v904 = vcvt.s32.f32 %v888
        %v905 = vcvt.s32.f32 %v889
        %v906 = vcvt.s32.f32 %v890
        %v907 = vcvt.s32.f32 %v891
        %v908 = vcvt.s32.f32 %v892
        %v909 = vcvt.s32.f32 %v893
        %v910 = vcvt.s32.f32 %v894
        %v911 = vcvt.s32.f32 %v895
        %v912 = vcvt.s32.f32 %v896
        %v913 = vcvt.s32.f32 %v897
        %v914 = vcvt.s32.f32 %v898
        %v915 = vcvt.s32.f32 %v899
        %v916 = vcvt.s32.f32 %v900
        %v917 = vcvt.s32.f32 %v901
        %v918 = vadd.f32 %v849, %v902
        %v919 = vadd.f32 %v850, %v903
        %v920 = vadd.f32 %v851, %v904
        %v921 = vadd.f32 %v852, %v905
        %v922 = vadd.f32 %v853, %v906
        %v923 = vadd.f32 %v854, %v907
        %v924 = vadd.f32 %v855, %v908
        %v925 = vadd.f32 %v856, %v909
        %v926 = vadd.f32 %v857, %v910
        %v927 = vadd.f32 %v858, %v911
        %v928 = vadd.f32 %v859, %v912
        %v929 = vadd.f32 %v860, %v913
        %v930 = vadd.f32 %v861, %v914
        %v931 = vadd.f32 %v862, %v915
        %v932 = vadd.f32 %v863, %v916
        %v933 = vadd.f32 %v864, %v917
        %v934 = vld [vmem:[%s326] sm:$0xff]
        %v935 = vld [vmem:[%s326 + $0x8] sm:$0xff]
        %v936 = vld [vmem:[%s326 + $0x10] sm:$0xff]
        %v937 = vld [vmem:[%s326 + $0x18] sm:$0xff]
        %938 = vmatprep.subr.mxu0 0.0
        %939 = vmatpush1.msra.mxu0 %v933
        %940 = vmatprep.subr.mxu0 0.0
        %941 = vmatpush1.msra.mxu0 %v932
        %942 = vmatprep.subr.mxu0 0.0
        %943 = vmatpush1.msra.mxu0 %v931
        %944 = vmatprep.subr.mxu0 0.0
        %945 = vmatpush1.msra.mxu0 %v930
        %946 = vmatprep.subr.mxu0 0.0
        %947 = vmatpush1.msra.mxu0 %v929
        %948 = vmatprep.subr.mxu0 0.0
        %949 = vmatpush1.msra.mxu0 %v928
        %950 = vmatprep.subr.mxu0 0.0
        %951 = vmatpush1.msra.mxu0 %v927
        %952 = vmatprep.subr.mxu0 0.0
        %953 = vmatpush1.msra.mxu0 %v926
        %954 = vmatprep.subr.mxu0 0.0
        %955 = vmatpush1.msra.mxu0 %v925
        %956 = vmatprep.subr.mxu0 0.0
        %957 = vmatpush1.msra.mxu0 %v924
        %958 = vmatprep.subr.mxu0 0.0
        %959 = vmatpush1.msra.mxu0 %v923
        %960 = vmatprep.subr.mxu0 0.0
        %961 = vmatpush1.msra.mxu0 %v922
        %962 = vmatprep.subr.mxu0 0.0
        %963 = vmatpush1.msra.mxu0 %v921
        %964 = vmatprep.subr.mxu0 0.0
        %965 = vmatpush1.msra.mxu0 %v920
        %966 = vmatprep.subr.mxu0 0.0
        %967 = vmatpush1.msra.mxu0 %v919
        %968 = vmatprep.subr.mxu0 0.0
        %969 = vmatpush1.msra.mxu0 %v918
        %970 = vmatprep.subr.mxu0 0.0
        %971 = vmatpush2.msra.mxu0 0.0
        %972 = vmatprep.subr.mxu0 0.0
        %973 = vmatpush2.msra.mxu0 0.0
        %974 = vmatprep.subr.mxu0 0.0
        %975 = vmatpush2.msra.mxu0 0.0
        %976 = vmatprep.subr.mxu0 0.0
        %977 = vmatpush2.msra.mxu0 0.0
        %978 = vmatprep.subr.mxu0 0.0
        %979 = vmatpush2.msra.mxu0 0.0
        %980 = vmatprep.subr.mxu0 0.0
        %981 = vmatpush2.msra.mxu0 0.0
        %982 = vmatprep.subr.mxu0 0.0
        %983 = vmatpush2.msra.mxu0 0.0
        %984 = vmatprep.subr.mxu0 0.0
        %985 = vmatpush2.msra.mxu0 0.0
        %986 = vmatprep.subr.mxu0 0.0
        %987 = vmatpush2.msra.mxu0 0.0
        %988 = vmatprep.subr.mxu0 0.0
        %989 = vmatpush2.msra.mxu0 0.0
        %990 = vmatprep.subr.mxu0 0.0
        %991 = vmatpush2.msra.mxu0 0.0
        %992 = vmatprep.subr.mxu0 0.0
        %993 = vmatpush2.msra.mxu0 0.0
        %994 = vmatprep.subr.mxu0 0.0
        %995 = vmatpush2.msra.mxu0 0.0
        %996 = vmatprep.subr.mxu0 0.0
        %997 = vmatpush2.msra.mxu0 0.0
        %998 = vmatprep.subr.mxu0 0.0
        %999 = vmatpush2.msra.mxu0 0.0
        %1000 = vmatprep.subr.mxu0 0.0
        %1001 = vmatpush2.msra.mxu0 0.0
        %1002 = vmatprep.mubr.f32.mxu0 0.0
        %1003 = vmatmul.mubr.f32.gmra.mxu0 %v934
        %v1004 = vpop.f32.mrf.mxu0
        %v1005 = vadd.f32 0.0, %v1004
        %v1006 = vpop.f32.mrf.mxu0
        %1007 = vmatprep.mubr.f32.mxu0 0.0
        %1008 = vmatmul.mubr.f32.gmra.mxu0 %v935
        %v1009 = vpop.f32.mrf.mxu0
        %v1010 = vadd.f32 0.0, %v1009
        %v1011 = vpop.f32.mrf.mxu0
        %1012 = vmatprep.mubr.f32.mxu0 0.0
        %1013 = vmatmul.mubr.f32.gmra.mxu0 %v936
        %v1014 = vpop.f32.mrf.mxu0
        %v1015 = vadd.f32 0.0, %v1014
        %v1016 = vpop.f32.mrf.mxu0
        %1017 = vmatprep.mubr.f32.mxu0 0.0
        %1018 = vmatmul.mubr.f32.gmra.mxu0 %v937
        %v1019 = vpop.f32.mrf.mxu0
        %v1020 = vadd.f32 0.0, %v1019
        %v1021 = vpop.f32.mrf.mxu0
        %1022 = vdwg.mxu0
        %s1023 = sld [smem:[#allocation2]]
        %s1024 = sadd.f32 %s1023, 1.0
        %v1025 = vld [vmem:[%s317] sm:$0xff]
        %v1026 = vld [vmem:[%s317 + $0x8] sm:$0xff]
        %v1027 = vld [vmem:[%s317 + $0x10] sm:$0xff]
        %v1028 = vld [vmem:[%s317 + $0x18] sm:$0xff]
        %v1029 = vstv %s1024
        %v1030 = vmul.f32 %v1029, %v1025
        %v1031 = vmul.f32 %v1029, %v1026
        %v1032 = vmul.f32 %v1029, %v1027
        %v1033 = vmul.f32 %v1029, %v1028
        %v1034 = vadd.f32 %v1030, %v1005
        %v1035 = vadd.f32 %v1031, %v1010
        %v1036 = vadd.f32 %v1032, %v1015
        %v1037 = vadd.f32 %v1033, %v1020
        %v1038 = vld [vmem:[%s4] sm:$0xff]
        %v1039 = vld [vmem:[%s4 + $0x8] sm:$0xff]
        %v1040 = vld [vmem:[%s4 + $0x10] sm:$0xff]
        %v1041 = vld [vmem:[%s4 + $0x18] sm:$0xff]
        %v1042 = vld [vmem:[%s5] sm:$0xff]
        %v1043 = vld [vmem:[%s5 + $0x8] sm:$0xff]
        %v1044 = vld [vmem:[%s5 + $0x10] sm:$0xff]
        %v1045 = vld [vmem:[%s5 + $0x18] sm:$0xff]
        %1047 = vset.pattern.permute.xlu0 0
        %1048 = vperm.xlu0 %1047, %v1042
        %v1049 = vpop.permute.xlu0 %1048
        %1052 = vset.pattern.permute.xlu0 0
        %1053 = vperm.xlu0 %1052, %v1043
        %v1054 = vpop.permute.xlu0 %1053
        %1057 = vset.pattern.permute.xlu0 0
        %1058 = vperm.xlu0 %1057, %v1044
        %v1059 = vpop.permute.xlu0 %1058
        %1062 = vset.pattern.permute.xlu0 0
        %1063 = vperm.xlu0 %1062, %v1045
        %v1064 = vpop.permute.xlu0 %1063
        %vm1066 = vcmask 261120
        %v1068 = vsel %vm1066, %v1038, 0
        %v1071 = vsel %vm1066, %v1039, 0
        %v1074 = vsel %vm1066, %v1040, 0
        %v1077 = vsel %vm1066, %v1041, 0
        %1079 = vmatprep.subr.mxu0 0.0
        %1080 = vmatpush1.msra.mxu0 0.0
        %1081 = vmatprep.subr.mxu0 0.0
        %1082 = vmatpush1.msra.mxu0 0.0
        %1083 = vmatprep.subr.mxu0 0.0
        %1084 = vmatpush1.msra.mxu0 0.0
        %1085 = vmatprep.subr.mxu0 0.0
        %1086 = vmatpush1.msra.mxu0 0.0
        %1087 = vmatprep.subr.mxu0 0.0
        %1088 = vmatpush1.msra.mxu0 0.0
        %1089 = vmatprep.subr.mxu0 0.0
        %1090 = vmatpush1.msra.mxu0 0.0
        %1091 = vmatprep.subr.mxu0 0.0
        %1092 = vmatpush1.msra.mxu0 0.0
        %1093 = vmatprep.subr.mxu0 0.0
        %1094 = vmatpush1.msra.mxu0 0.0
        %1095 = vmatprep.subr.mxu0 0.0
        %1096 = vmatpush1.msra.mxu0 0.0
        %1097 = vmatprep.subr.mxu0 0.0
        %1098 = vmatpush1.msra.mxu0 0.0
        %1099 = vmatprep.subr.mxu0 0.0
        %1100 = vmatpush1.msra.mxu0 0.0
        %1101 = vmatprep.subr.mxu0 0.0
        %1102 = vmatpush1.msra.mxu0 0.0
        %1103 = vmatprep.subr.mxu0 0.0
        %1104 = vmatpush1.msra.mxu0 %v1037
        %1105 = vmatprep.subr.mxu0 0.0
        %1106 = vmatpush1.msra.mxu0 %v1036
        %1107 = vmatprep.subr.mxu0 0.0
        %1108 = vmatpush1.msra.mxu0 %v1035
        %1109 = vmatprep.subr.mxu0 0.0
        %1110 = vmatpush1.msra.mxu0 %v1034
        %1111 = vmatprep.subr.mxu0 0.0
        %1112 = vmatpush2.msra.mxu0 0.0
        %1113 = vmatprep.subr.mxu0 0.0
        %1114 = vmatpush2.msra.mxu0 0.0
        %1115 = vmatprep.subr.mxu0 0.0
        %1116 = vmatpush2.msra.mxu0 0.0
        %1117 = vmatprep.subr.mxu0 0.0
        %1118 = vmatpush2.msra.mxu0 0.0
        %1119 = vmatprep.subr.mxu0 0.0
        %1120 = vmatpush2.msra.mxu0 0.0
        %1121 = vmatprep.subr.mxu0 0.0
        %1122 = vmatpush2.msra.mxu0 0.0
        %1123 = vmatprep.subr.mxu0 0.0
        %1124 = vmatpush2.msra.mxu0 0.0
        %1125 = vmatprep.subr.mxu0 0.0
        %1126 = vmatpush2.msra.mxu0 0.0
        %1127 = vmatprep.subr.mxu0 0.0
        %1128 = vmatpush2.msra.mxu0 0.0
        %1129 = vmatprep.subr.mxu0 0.0
        %1130 = vmatpush2.msra.mxu0 0.0
        %1131 = vmatprep.subr.mxu0 0.0
        %1132 = vmatpush2.msra.mxu0 0.0
        %1133 = vmatprep.subr.mxu0 0.0
        %1134 = vmatpush2.msra.mxu0 0.0
        %1135 = vmatprep.subr.mxu0 0.0
        %1136 = vmatpush2.msra.mxu0 0.0
        %1137 = vmatprep.subr.mxu0 0.0
        %1138 = vmatpush2.msra.mxu0 0.0
        %1139 = vmatprep.subr.mxu0 0.0
        %1140 = vmatpush2.msra.mxu0 0.0
        %1141 = vmatprep.subr.mxu0 0.0
        %1142 = vmatpush2.msra.mxu0 0.0
        %1143 = vmatprep.mubr.f32.mxu0 0.0
        %1144 = vmatmul.mubr.f32.gmra.mxu0 %v1068
        %v1145 = vpop.f32.mrf.mxu0
        %v1146 = vadd.f32 %v1049, %v1145
        %v1147 = vpop.f32.mrf.mxu0
        %1148 = vmatprep.mubr.f32.mxu0 0.0
        %1149 = vmatmul.mubr.f32.gmra.mxu0 %v1071
        %v1150 = vpop.f32.mrf.mxu0
        %v1151 = vadd.f32 %v1054, %v1150
        %v1152 = vpop.f32.mrf.mxu0
        %1153 = vmatprep.mubr.f32.mxu0 0.0
        %1154 = vmatmul.mubr.f32.gmra.mxu0 %v1074
        %v1155 = vpop.f32.mrf.mxu0
        %v1156 = vadd.f32 %v1059, %v1155
        %v1157 = vpop.f32.mrf.mxu0
        %1158 = vmatprep.mubr.f32.mxu0 0.0
        %1159 = vmatmul.mubr.f32.gmra.mxu0 %v1077
        %v1160 = vpop.f32.mrf.mxu0
        %v1161 = vadd.f32 %v1064, %v1160
        %v1162 = vpop.f32.mrf.mxu0
        %1163 = vdwg.mxu0
        %v1164 = vmax.f32 %v1146, 0.0
        %v1165 = vmax.f32 %v1151, 0.0
        %v1166 = vmax.f32 %v1156, 0.0
        %v1167 = vmax.f32 %v1161, 0.0
        %1168 = vst [vmem:[%s364] sm:$0xff] %v1164
        %1169 = vst [vmem:[%s364 + $0x8] sm:$0xff] %v1165
        %1170 = vst [vmem:[%s364 + $0x10] sm:$0xff] %v1166
        %1171 = vst [vmem:[%s364 + $0x18] sm:$0xff] %v1167
        %s1172 = sand.u32 %s194, 1
        %s1173 = scalar_lea.sflag [#allocation5], %s1172
        %s1174 = sand.u32 %s194, 1
        %s1175 = smul.addr %s1174, 32
        %s1176 = scalar_lea.vmem [#allocation9], %s1175
        // Predicated region
        $region57: #{tpu_custom_call.1} parent=43 // pred_check
          %p1177 = pneg %p204
        $region58: #{tpu_custom_call.1} parent=43 // pred_check_branch
          %1179 = sbr.rel (%p1177) target = $region60
        $region59: #{tpu_custom_call.1} parent=43 // pred_region
          %s1181 = ssub.s32 512, 512
          %1182 = vsyncadd %s1173, %s1181
          %s1183 = smul.addr %s31, 4
          %s1184 = sadd.s32 %s32, %s1183
          %s1185 = smul.addr %s1184, 128
          %s1186 = scalar_lea.hbm %s6, %s1185
          %s1187 = sshll.u32 %s1176, 4
          %s1188 = int_to_ptr.vmem [resolvable:$true] %s1187
          %1193 = dma.vmem_to_hbm [thread:$0]  %s1188, 512, %s1186, %s1173, 128, 128, 8
        $region60: #{tpu_custom_call.1} parent=43 // pred_fallthru
          _
      $region44: #{tpu_custom_call.1} parent=5 // pred_fallthru
        _
      %p1194 = scmp.le.s32.totalorder 2, %s22
      // Predicated region
      $region61: #{tpu_custom_call.1} parent=5 // pred_check
        %p1195 = pneg %p1194
      $region62: #{tpu_custom_call.1} parent=5 // pred_check_branch
        %1197 = sbr.rel (%p1195) target = $region64
      $region63: #{tpu_custom_call.1} parent=5 // pred_region
        %s1198 = ssub.s32 %s22, 2
        // Predicated region
        $region65: #{tpu_custom_call.1} parent=63 // pred_check
          %p1199 = pneg %p210
        $region66: #{tpu_custom_call.1} parent=63 // pred_check_branch
          %1201 = sbr.rel (%p1199) target = $region68
        $region67: #{tpu_custom_call.1} parent=63 // pred_region
          %s1202 = sand.u32 %s195, 1
          %s1203 = scalar_lea.sflag [#allocation5], %s1202
          %s1204 = sand.u32 %s195, 1
          %s1205 = smul.addr %s1204, 32
          %s1206 = scalar_lea.vmem [#allocation9], %s1205
          %1207 = dma.done %s1203, 512
        $region68: #{tpu_custom_call.1} parent=63 // pred_fallthru
          _
      $region64: #{tpu_custom_call.1} parent=5 // pred_fallthru
        _
    $region6: #{tpu_custom_call.1} parent=1 // loop_footer
      %s26 = sadd.s32 1, %s22
    $region7: #{tpu_custom_call.1} parent=1 // loop_footer_branch
      %21 = sbr.rel target = $region3
    $region8: #{tpu_custom_call.1} parent=1 // loop_exit
      _
    %1208 = vsyncpa [#allocation4], 1
    %s1209 = scalar_lea.sflag [#allocation4], 1
    %1210 = vsyncpa %s1209, 1
    %1211 = vsyncpa [#allocation7], 1
    %s1212 = scalar_lea.sflag [#allocation7], 1
    %1213 = vsyncpa %s1212, 1
    %1214 = vsyncpa [#allocation5], 1
    %s1215 = scalar_lea.sflag [#allocation5], 1
    %1216 = vsyncpa %s1215, 1

</llo_original>
